<compile_context>
chip_gen: v5e
topology: v5e:2x2
jax: 0.10.0
libtpu: 0.0.40
codegen_flags: <defaults>
</compile_context>

<pallas_src>
import functools

import numpy as np
import jax
import jax.numpy as jnp
from jax.experimental import pallas as pl
from jax.experimental.pallas import tpu as pltpu

APPLY_MASK = True


# ------------------------------ helpers -------------------------------------

def _round_up(x, m):
    return ((x + m - 1) // m) * m


def _pick_tile(padded_dim, preferred):
    """Largest multiple of 128 <= preferred that divides the (128-padded) dim."""
    t = min(preferred, padded_dim)
    while padded_dim % t != 0:
        t -= 128
    return t


# --------------------------- tiled linear kernel -----------------------------

def _linear_kernel(x_ref, w_ref, b_ref, rmask_ref, o_ref, acc_ref):
    # x: [tm, tk] bf16, w: [tk, tn] bf16, b: [1, tn] f32, rmask: [tm, 1] f32
    @pl.when(pl.program_id(2) == 0)
    def _init():
        acc_ref[...] = jnp.zeros_like(acc_ref)

    acc_ref[...] += jnp.dot(x_ref[...], w_ref[...],
                            preferred_element_type=jnp.float32)

    @pl.when(pl.program_id(2) == pl.num_programs(2) - 1)
    def _finalize():
        y = (acc_ref[...] + b_ref[...]) * rmask_ref[...]   # bias + fused row-mask (free VPU)
        o_ref[...] = y.astype(o_ref.dtype)


def init_linear(key, in_f, out_f):
    # PyTorch nn.Linear default init (weight_norm is a reparametrization: forward unchanged).
    kw, kb = jax.random.split(key)
    bound = 1.0 / np.sqrt(in_f)
    w = jax.random.uniform(kw, (out_f, in_f), jnp.float32, -bound, bound)
    b = jax.random.uniform(kb, (out_f,), jnp.float32, -bound, bound)
    return w, b


def prepare_linear(w, b, col_scale=None):
    """Pre-transpose to [in,out], (optionally) fold a per-output-column scale,
    pad to 128-multiples, cast to bf16 -- done once."""
    out_f, in_f = w.shape
    w = jnp.asarray(w, jnp.float32)
    b = jnp.asarray(b, jnp.float32)
    if col_scale is not None:
        cs = jnp.asarray(col_scale, jnp.float32)
        w = w * cs[:, None]
        b = b * cs
    kp = _round_up(in_f, 128)
    np_ = _round_up(out_f, 128)
    wt = jnp.pad(jnp.transpose(w), ((0, kp - in_f), (0, np_ - out_f))).astype(jnp.bfloat16)
    bp = jnp.pad(b, (0, np_ - out_f)).reshape(1, np_)
    return {"wt": wt, "b": bp, "in_features": int(in_f), "out_features": int(out_f)}


def prepare_output_linear(w, b, primary_in):
    """Split the output FCNet weight so that Linear(cat([x, x_update])) can be computed
    in-kernel as x @ w1 + x_update @ w2 + b (cat order in the reference is (x, x_update))."""
    out_f, in_f = w.shape
    wt = jnp.transpose(jnp.asarray(w, jnp.float32))            # [in, out]
    return {
        "w1": wt[:primary_in, :].astype(jnp.bfloat16),         # (primary_in, out)
        "w2": wt[primary_in:, :].astype(jnp.bfloat16),         # (output_size, out)
        "b": jnp.asarray(b, jnp.float32).reshape(1, out_f),
        "out_features": int(out_f),
    }


def pallas_linear(x, lin, row_mask=None, out_dtype=jnp.float32, tm=256, tn=256, tk=512):
    """FCNet forward (weight_norm Linear, drop=0) with optional fused per-row mask."""
    K, N = lin["in_features"], lin["out_features"]
    Kp, Np = lin["wt"].shape
    lead = x.shape[:-1]
    M = int(np.prod(lead)) if lead else 1

    tm_e = min(tm, _round_up(M, 8))
    Mp = _round_up(M, tm_e)
    tk_e = _pick_tile(Kp, tk)
    tn_e = _pick_tile(Np, tn)

    x2 = jnp.pad(x.reshape(M, K), ((0, Mp - M), (0, Kp - K))).astype(jnp.bfloat16)
    if row_mask is None:
        rm = jnp.ones((Mp, 1), jnp.float32)
    else:
        rm = jnp.pad(row_mask.reshape(M, 1).astype(jnp.float32), ((0, Mp - M), (0, 0)))

    grid = (Mp // tm_e, Np // tn_e, Kp // tk_e)
    out = pl.pallas_call(
        _linear_kernel,
        out_shape=jax.ShapeDtypeStruct((Mp, Np), out_dtype),
        grid_spec=pltpu.PrefetchScalarGridSpec(
            num_scalar_prefetch=0,
            grid=grid,
            in_specs=[
                pl.BlockSpec((tm_e, tk_e), lambda i, j, k: (i, k)),
                pl.BlockSpec((tk_e, tn_e), lambda i, j, k: (k, j)),   # weight-stationary over i
                pl.BlockSpec((1, tn_e), lambda i, j, k: (0, j)),
                pl.BlockSpec((tm_e, 1), lambda i, j, k: (i, 0)),
            ],
            out_specs=pl.BlockSpec((tm_e, tn_e), lambda i, j, k: (i, j)),
            scratch_shapes=[pltpu.VMEM((tm_e, tn_e), jnp.float32)],
        ),
        compiler_params=pltpu.CompilerParams(
            dimension_semantics=("parallel", "parallel", "arbitrary"),
            vmem_limit_bytes=32 * 1024 * 1024,   # fits v5e/v6e/v7x scoped VMEM
        ),
    )(x2, lin["wt"], lin["b"], rm)
    return out[:M, :N].reshape(lead + (N,))


# ----------- fused inter-modality attention + output projection kernel -------

def _attn_output_kernel(v_trans_ref, q_trans_ref, v_bias_ref, q_bias_ref,
                        v_in_ref, q_in_ref,
                        wv1_ref, wv2_ref, bv_ref,
                        wq1_ref, wq2_ref, bq_ref,
                        v_out_ref, q_out_ref,
                        v_upd_ref, q_upd_ref,
                        *, num_head, out_size):
    D = out_size
    hd = D // num_head

    vt = v_trans_ref[0]          # (No, 3D) bf16, fused key|qry|val, rows already masked,
    qt = q_trans_ref[0]          # (Nl, 3D) bf16, 1/sqrt(hd) pre-folded into the qry columns
    v_bias = v_bias_ref[0]       # (1, No) additive key-mask bias: 0 or -1e30
    q_bias = q_bias_ref[0]       # (1, Nl)

    v_key, v_qry, v_val = vt[:, 0:D], vt[:, D:2 * D], vt[:, 2 * D:3 * D]
    q_key, q_qry, q_val = qt[:, 0:D], qt[:, D:2 * D], qt[:, 2 * D:3 * D]

    dn = (((1,), (1,)), ((), ()))   # q @ k^T (contract the feature axis of both)
    for h in range(num_head):
        lo, hi = h * hd, (h + 1) * hd
        # v attends over q keys ("q2v" in the reference)  ->  v_update head slice
        s = jax.lax.dot_general(v_qry[:, lo:hi], q_key[:, lo:hi], dn,
                                preferred_element_type=jnp.float32) + q_bias
        p = jnp.exp(s - jnp.max(s, axis=-1, keepdims=True))
        p = p * pl.reciprocal(jnp.sum(p, axis=-1, keepdims=True), approx=True)
        v_upd_ref[:, lo:hi] = jnp.dot(p.astype(jnp.bfloat16), q_val[:, lo:hi],
                                      preferred_element_type=jnp.float32)
        # q attends over v keys ("v2q")  ->  q_update head slice
        s2 = jax.lax.dot_general(q_qry[:, lo:hi], v_key[:, lo:hi], dn,
                                 preferred_element_type=jnp.float32) + v_bias
        p2 = jnp.exp(s2 - jnp.max(s2, axis=-1, keepdims=True))
        p2 = p2 * pl.reciprocal(jnp.sum(p2, axis=-1, keepdims=True), approx=True)
        q_upd_ref[:, lo:hi] = jnp.dot(p2.astype(jnp.bfloat16), v_val[:, lo:hi],
                                      preferred_element_type=jnp.float32)

    # Fused output FCNet:  Linear(cat([x, x_update])) == x @ W1 + x_update @ W2 + b
    v_in = v_in_ref[0].astype(jnp.bfloat16)
    q_in = q_in_ref[0].astype(jnp.bfloat16)
    v_upd = v_upd_ref[...].astype(jnp.bfloat16)
    q_upd = q_upd_ref[...].astype(jnp.bfloat16)
    v_out_ref[0] = (jnp.dot(v_in, wv1_ref[...], preferred_element_type=jnp.float32)
                    + jnp.dot(v_upd, wv2_ref[...], preferred_element_type=jnp.float32)
                    + bv_ref[...]).astype(v_out_ref.dtype)
    q_out_ref[0] = (jnp.dot(q_in, wq1_ref[...], preferred_element_type=jnp.float32)
                    + jnp.dot(q_upd, wq2_ref[...], preferred_element_type=jnp.float32)
                    + bq_ref[...]).astype(q_out_ref.dtype)


def pallas_inter_attention_output(v, q, v_trans, q_trans, v_key_bias, q_key_bias,
                                  v_out_par, q_out_par, output_size, num_head):
    B, No, threeD = v_trans.shape
    _, Nl, _ = q_trans.shape
    v_size = v.shape[-1]
    q_size = q.shape[-1]
    out_f = v_out_par["out_features"]
    kernel = functools.partial(_attn_output_kernel, num_head=num_head, out_size=output_size)
    return pl.pallas_call(
        kernel,
        out_shape=(jax.ShapeDtypeStruct((B, No, out_f), jnp.float32),
                   jax.ShapeDtypeStruct((B, Nl, out_f), jnp.float32)),
        grid_spec=pltpu.PrefetchScalarGridSpec(
            num_scalar_prefetch=0,
            grid=(B,),
            in_specs=[
                pl.BlockSpec((1, No, threeD), lambda b: (b, 0, 0)),
                pl.BlockSpec((1, Nl, threeD), lambda b: (b, 0, 0)),
                pl.BlockSpec((1, 1, No), lambda b: (b, 0, 0)),
                pl.BlockSpec((1, 1, Nl), lambda b: (b, 0, 0)),
                pl.BlockSpec((1, No, v_size), lambda b: (b, 0, 0)),
                pl.BlockSpec((1, Nl, q_size), lambda b: (b, 0, 0)),
                # small, grid-invariant weights: full-array blocks, fetched once
                pl.BlockSpec((v_size, out_f), lambda b: (0, 0)),
                pl.BlockSpec((output_size, out_f), lambda b: (0, 0)),
                pl.BlockSpec((1, out_f), lambda b: (0, 0)),
                pl.BlockSpec((q_size, out_f), lambda b: (0, 0)),
                pl.BlockSpec((output_size, out_f), lambda b: (0, 0)),
                pl.BlockSpec((1, out_f), lambda b: (0, 0)),
            ],
            out_specs=(pl.BlockSpec((1, No, out_f), lambda b: (b, 0, 0)),
                       pl.BlockSpec((1, Nl, out_f), lambda b: (b, 0, 0))),
            scratch_shapes=[pltpu.VMEM((No, output_size), jnp.float32),
                            pltpu.VMEM((Nl, output_size), jnp.float32)],
        ),
        compiler_params=pltpu.CompilerParams(dimension_semantics=("parallel",)),
    )(v_trans, q_trans, v_key_bias, q_key_bias, v, q,
      v_out_par["w1"], v_out_par["w2"], v_out_par["b"],
      q_out_par["w1"], q_out_par["w2"], q_out_par["b"])


# --------------------------- module forward ----------------------------------

def inter_modality_update(params, v, q, v_mask, q_mask, output_size, num_head):
    """InterModalityUpdate.forward"""
    B, No = v_mask.shape
    _, Nl = q_mask.shape
    v_rm = v_mask if APPLY_MASK else None
    q_rm = q_mask if APPLY_MASK else None

    # Fused key|qry|val projections: sequence-row mask applied inside the linear kernel,
    # qry scale pre-folded into the weights, bf16 intermediate (halves HBM traffic).
    v_trans = pallas_linear(v, params["v_lin"], row_mask=v_rm, out_dtype=jnp.bfloat16)
    q_trans = pallas_linear(q, params["q_lin"], row_mask=q_rm, out_dtype=jnp.bfloat16)

    # additive key-mask biases (0 where valid, -1e30 where masked); avoids -inf/NaN
    if APPLY_MASK:
        v_key_bias = ((v_mask.astype(jnp.float32) - 1.0) * 1e30).reshape(B, 1, No)
        q_key_bias = ((q_mask.astype(jnp.float32) - 1.0) * 1e30).reshape(B, 1, Nl)
    else:
        v_key_bias = jnp.zeros((B, 1, No), jnp.float32)
        q_key_bias = jnp.zeros((B, 1, Nl), jnp.float32)

    # attention (both directions) + both output FCNets in a single fused kernel
    return pallas_inter_attention_output(
        v, q, v_trans, q_trans, v_key_bias, q_key_bias,
        params["v_output"], params["q_output"], output_size, num_head)


# ----------------------------- pure-JAX reference ----------------------------

def reference_forward(raw, v, q, v_mask, q_mask, output_size, num_head):
    def lin(x, wb):
        w, b = wb
        return x @ w.T + b
    v_trans = lin(v, raw["v_lin"])
    q_trans = lin(q, raw["q_lin"])
    if APPLY_MASK:
        v_trans = v_trans * v_mask[:, :, None]
        q_trans = q_trans * q_mask[:, :, None]
    D, H = output_size, num_head
    hd = D // H
    v_key, v_qry, v_val = v_trans[..., :D], v_trans[..., D:2 * D], v_trans[..., 2 * D:]
    q_key, q_qry, q_val = q_trans[..., :D], q_trans[..., D:2 * D], q_trans[..., 2 * D:]
    scale = float(np.sqrt(hd))
    v_upds, q_upds = [], []
    for h in range(H):
        sl = slice(h * hd, (h + 1) * hd)
        q2v = jnp.einsum('bqd,bkd->bqk', v_qry[..., sl], q_key[..., sl]) / scale
        v2q = jnp.einsum('bqd,bkd->bqk', q_qry[..., sl], v_key[..., sl]) / scale
        if APPLY_MASK:
            q2v = jnp.where(q_mask[:, None, :] == 0, -jnp.inf, q2v)
            v2q = jnp.where(v_mask[:, None, :] == 0, -jnp.inf, v2q)
        v_upds.append(jnp.einsum('bqk,bkd->bqd', jax.nn.softmax(q2v, -1), q_val[..., sl]))
        q_upds.append(jnp.einsum('bqk,bkd->bqd', jax.nn.softmax(v2q, -1), v_val[..., sl]))
    v_update = jnp.concatenate(v_upds, axis=-1)
    q_update = jnp.concatenate(q_upds, axis=-1)
    updated_v = lin(jnp.concatenate([v, v_update], -1), raw["v_output"])
    updated_q = lin(jnp.concatenate([q, q_update], -1), raw["q_output"])
    return updated_v, updated_q


# --------------------------------- main ---------------------------------------

if __name__ == "__main__":
    B, num_obj, max_len = 2, 8, 8
    v_size, q_size = 64, 64
    output_size, num_head = 32, 8

    key = jax.random.PRNGKey(0)
    k_v, k_q, k1, k2, k3, k4 = jax.random.split(key, 6)
    v = jax.random.normal(k_v, (B, num_obj, v_size), jnp.float32)
    q = jax.random.normal(k_q, (B, max_len, q_size), jnp.float32)
    v_mask = jnp.array([[1, 1, 1, 1, 1, 1, 0, 0],
                        [1, 1, 1, 1, 1, 1, 1, 1]], jnp.float32)
    q_mask = jnp.array([[1, 1, 1, 1, 1, 0, 0, 0],
                        [1, 1, 1, 1, 1, 1, 1, 0]], jnp.float32)

    raw = {
        "v_lin": init_linear(k1, v_size, 3 * output_size),
        "q_lin": init_linear(k2, q_size, 3 * output_size),
        "v_output": init_linear(k3, output_size + v_size, output_size),
        "q_output": init_linear(k4, output_size + q_size, output_size),
    }

    # Fold 1/sqrt(head_dim) into the qry columns of the fused kqv projections (exactly
    # equivalent: the 0/1 mask multiply commutes with the scale).
    qkv_scale = np.ones((3 * output_size,), np.float32)
    qkv_scale[output_size:2 * output_size] = 1.0 / np.sqrt(output_size // num_head)
    params = {
        "v_lin": prepare_linear(*raw["v_lin"], col_scale=qkv_scale),
        "q_lin": prepare_linear(*raw["q_lin"], col_scale=qkv_scale),
        "v_output": prepare_output_linear(*raw["v_output"], primary_in=v_size),
        "q_output": prepare_output_linear(*raw["q_output"], primary_in=q_size),
    }

    upd_v, upd_q = inter_modality_update(params, v, q, v_mask, q_mask,
                                         output_size, num_head)
    upd_v, upd_q = jax.block_until_ready((upd_v, upd_q))

    ref_v, ref_q = reference_forward(raw, v, q, v_mask, q_mask, output_size, num_head)
    assert upd_v.shape == (B, num_obj, output_size)
    assert upd_q.shape == (B, max_len, output_size)
    assert bool(jnp.all(jnp.isfinite(upd_v))) and bool(jnp.all(jnp.isfinite(upd_q)))
    # Loose tolerance: Pallas kernels run the matmuls in bf16 (f32 accumulation) and use
    # the EUP approximate reciprocal for the softmax denominator.
    err_v = float(jnp.max(jnp.abs(upd_v - ref_v)))
    err_q = float(jnp.max(jnp.abs(upd_q - ref_q)))
    assert err_v < 0.2 and err_q < 0.2, (err_v, err_q)
    print("KERNEL_OK")
</pallas_src>

<mosaic_0001>
module attributes {stable_mosaic.version = 11 : i64} {
  func.func @_linear_kernel(%arg0: i32, %arg1: i32, %arg2: i32, %arg3: memref<16x128xbf16, #tpu.memory_space<vmem>>, %arg4: memref<128x128xbf16, #tpu.memory_space<vmem>>, %arg5: memref<1x128xf32, #tpu.memory_space<vmem>>, %arg6: memref<16x1xf32, #tpu.memory_space<vmem>>, %arg7: memref<16x128xbf16, #tpu.memory_space<vmem>>, %arg8: memref<16x128xf32, #tpu.memory_space<vmem>>) attributes {dimension_semantics = [#tpu.dimension_semantics<parallel>, #tpu.dimension_semantics<parallel>, #tpu.dimension_semantics<arbitrary>], iteration_bounds = array<i64: 1, 1, 1>, scalar_prefetch = 0 : i64, scratch_operands = 1 : i64, tpu.core_type = #tpu.core_type<tc>, window_params = [{transform_indices = @transform_0, window_bounds = array<i64: 16, 128>}, {transform_indices = @transform_1, window_bounds = array<i64: 128, 128>}, {transform_indices = @transform_2, window_bounds = array<i64: 1, 128>}, {transform_indices = @transform_3, window_bounds = array<i64: 16, 1>}, {transform_indices = @transform_4, window_bounds = array<i64: 16, 128>}]} {
    %c0_i32 = arith.constant 0 : i32
    %0 = arith.cmpi eq, %arg2, %c0_i32 : i32
    %1 = arith.extui %0 : i1 to i32
    %c0_i32_0 = arith.constant 0 : i32
    %2 = arith.cmpi ne, %1, %c0_i32_0 : i32
    scf.if %2 {
      %cst_10 = arith.constant 0.000000e+00 : f32
      %12 = vector.broadcast %cst_10 : f32 to vector<16x128xf32>
      %c0_11 = arith.constant 0 : index
      %c0_12 = arith.constant 0 : index
      %13 = vector.load %arg8[%c0_11, %c0_12] : memref<16x128xf32, #tpu.memory_space<vmem>>, vector<16x128xf32>
      tpu.vector_store %arg8[%c0_11, %c0_12], %12 {strides = array<i32>} : memref<16x128xf32, #tpu.memory_space<vmem>>, vector<16x128xf32>,
    } else {
    }
    %c0 = arith.constant 0 : index
    %c0_1 = arith.constant 0 : index
    %3 = vector.load %arg8[%c0, %c0_1] : memref<16x128xf32, #tpu.memory_space<vmem>>, vector<16x128xf32>
    %c0_2 = arith.constant 0 : index
    %c0_3 = arith.constant 0 : index
    %4 = vector.load %arg3[%c0_2, %c0_3] : memref<16x128xbf16, #tpu.memory_space<vmem>>, vector<16x128xbf16>
    %c0_4 = arith.constant 0 : index
    %c0_5 = arith.constant 0 : index
    %5 = vector.load %arg4[%c0_4, %c0_5] : memref<128x128xbf16, #tpu.memory_space<vmem>>, vector<128x128xbf16>
    %cst = arith.constant dense<0.000000e+00> : vector<16x128xf32>
    %6 = tpu.matmul %4, %5, %cst {dimension_numbers = #tpu.dot_dimension_numbers<[1], [0], [0], [1], [0, 0, 1, 1], [], []>} : vector<16x128xbf16>, vector<128x128xbf16>, vector<16x128xf32> -> vector<16x128xf32>
    %7 = arith.addf %3, %6 : vector<16x128xf32>
    %c0_6 = arith.constant 0 : index
    %c0_7 = arith.constant 0 : index
    %8 = vector.load %arg8[%c0_6, %c0_7] : memref<16x128xf32, #tpu.memory_space<vmem>>, vector<16x128xf32>
    tpu.vector_store %arg8[%c0_6, %c0_7], %7 {strides = array<i32>} : memref<16x128xf32, #tpu.memory_space<vmem>>, vector<16x128xf32>,
    %c0_i32_8 = arith.constant 0 : i32
    %9 = arith.cmpi eq, %arg2, %c0_i32_8 : i32
    %10 = arith.extui %9 : i1 to i32
    %c0_i32_9 = arith.constant 0 : i32
    %11 = arith.cmpi ne, %10, %c0_i32_9 : i32
    scf.if %11 {
      %c0_10 = arith.constant 0 : index
      %c0_11 = arith.constant 0 : index
      %12 = vector.load %arg8[%c0_10, %c0_11] : memref<16x128xf32, #tpu.memory_space<vmem>>, vector<16x128xf32>
      %c0_12 = arith.constant 0 : index
      %c0_13 = arith.constant 0 : index
      %13 = vector.load %arg5[%c0_12, %c0_13] : memref<1x128xf32, #tpu.memory_space<vmem>>, vector<1x128xf32>
      %14 = vector.broadcast %13 : vector<1x128xf32> to vector<16x128xf32>
      %15 = arith.addf %12, %14 : vector<16x128xf32>
      %c0_14 = arith.constant 0 : index
      %c0_15 = arith.constant 0 : index
      %16 = vector.load %arg6[%c0_14, %c0_15] : memref<16x1xf32, #tpu.memory_space<vmem>>, vector<16x1xf32>
      %17 = vector.broadcast %16 : vector<16x1xf32> to vector<16x128xf32>
      %18 = arith.mulf %15, %17 : vector<16x128xf32>
      %19 = arith.truncf %18 : vector<16x128xf32> to vector<16x128xbf16>
      %c0_16 = arith.constant 0 : index
      %c0_17 = arith.constant 0 : index
      %20 = vector.load %arg7[%c0_16, %c0_17] : memref<16x128xbf16, #tpu.memory_space<vmem>>, vector<16x128xbf16>
      tpu.vector_store %arg7[%c0_16, %c0_17], %19 {strides = array<i32>} : memref<16x128xbf16, #tpu.memory_space<vmem>>, vector<16x128xbf16>,
    } else {
    }
    return
  }
  func.func @transform_0(%arg0: i32, %arg1: i32, %arg2: i32) -> (i32, i32) {
    %c0_i32 = arith.constant 0 : i32
    return %arg0, %arg2 : i32, i32
  }
  func.func @transform_1(%arg0: i32, %arg1: i32, %arg2: i32) -> (i32, i32) {
    %c0_i32 = arith.constant 0 : i32
    return %arg2, %arg1 : i32, i32
  }
  func.func @transform_2(%arg0: i32, %arg1: i32, %arg2: i32) -> (i32, i32) {
    %c0_i32 = arith.constant 0 : i32
    %c0_i32_0 = arith.constant 0 : i32
    return %c0_i32, %arg1 : i32, i32
  }
  func.func @transform_3(%arg0: i32, %arg1: i32, %arg2: i32) -> (i32, i32) {
    %c0_i32 = arith.constant 0 : i32
    %c0_i32_0 = arith.constant 0 : i32
    return %arg0, %c0_i32 : i32, i32
  }
  func.func @transform_4(%arg0: i32, %arg1: i32, %arg2: i32) -> (i32, i32) {
    %c0_i32 = arith.constant 0 : i32
    return %arg0, %arg1 : i32, i32
  }
}

</mosaic_0001>

<llo_original>
// kernel: tpu_custom_call.1
$region0: #{tpu_custom_call.1}
  #allocation0 [shape = 'u32[]', space=smem, size = 0x4, offset = 0x4, fixed_abs, tag = 'smem constant byte address 0x4 - core index']
  #allocation1 [shape = 'u32[72,128]{1,0:T(1,128)}', space=vmem, size = 0x9000, scoped, tag = 'internal scratch']
  #allocation2 [shape = 'f32[16,128]{1,0:T(8,128)}', space=vmem, size = 0x2000, scoped, tag = 'scratch operand']
  %s0 = inlined_call_operand.vmem [shape: bf16[16,128], index: 0, kind: input, shape index: {}]
  %s1 = inlined_call_operand.hbm [shape: bf16[128,128], index: 1, kind: input, shape index: {}]
  %s2 = inlined_call_operand.vmem [shape: f32[1,128], index: 2, kind: input, shape index: {}]
  %s3 = inlined_call_operand.vmem [shape: f32[16,1], index: 3, kind: input, shape index: {}]
  %s4 = inlined_call_operand.hbm [shape: bf16[16,128], index: 4, kind: output, shape index: {}]
  %s5 = sld [smem:[#allocation0]]
  $region38: #{tpu_custom_call.1} parent=0
    _
  %s7 = ssub.s32 1, %s5
  %s8 = scalar_select 0, %s7, %s5
  $region1: #{tpu_custom_call.1} parent=0
    #allocation3 [shape = 'u8[32768]{0}', space=vmem, size = 0x8000, scoped, tag = 'input window, operand 1, single buffered']
    #allocation4 [shape = 's32[1]{0}', space=sflag, size = 0x4, scoped, tag = 'scoped memory for tpu_custom_call.1']
    #allocation5 [shape = 's32[1]{0}', space=sflag, size = 0x4, scoped, tag = 'scoped memory for tpu_custom_call.1']
    #allocation6 [shape = 'u8[4096]{0}', space=vmem, size = 0x1000, scoped, tag = 'output window, operand 0, single buffered']
    %9 = vsyncpa [#allocation4], 0
    %10 = vsyncpa [#allocation5], 0
    // Predicated region
    $region2: #{tpu_custom_call.1} parent=1 // pred_check
      _
    $region3: #{tpu_custom_call.1} parent=1 // pred_check_branch
      %12 = sbr.rel (0) target = $region5
    $region4: #{tpu_custom_call.1} parent=1 // pred_region
      _
    $region5: #{tpu_custom_call.1} parent=1 // pred_fallthru
      _
    // Predicated region
    $region6: #{tpu_custom_call.1} parent=1 // pred_check
      _
    $region7: #{tpu_custom_call.1} parent=1 // pred_check_branch
      %14 = sbr.rel (0) target = $region9
    $region8: #{tpu_custom_call.1} parent=1 // pred_region
      %16 = vsyncadd [#allocation4], 0
      %s17 = sshll.u32 %s1, 4
      %s18 = int_to_ptr.hbm [resolvable:$true] %s17
      %s19 = sshll.u32 [#allocation3], 4
      %s20 = int_to_ptr.vmem [resolvable:$true] %s19
      %25 = dma.hbm_to_vmem [thread:$0]  %s18, 1024, %s20, [#allocation4], 64, 64, 4
    $region9: #{tpu_custom_call.1} parent=1 // pred_fallthru
      _
    // Predicated region
    $region10: #{tpu_custom_call.1} parent=1 // pred_check
      _
    $region11: #{tpu_custom_call.1} parent=1 // pred_check_branch
      %27 = sbr.rel (0) target = $region13
    $region12: #{tpu_custom_call.1} parent=1 // pred_region
      _
    $region13: #{tpu_custom_call.1} parent=1 // pred_fallthru
      _
    // Predicated region
    $region14: #{tpu_custom_call.1} parent=1 // pred_check
      _
    $region15: #{tpu_custom_call.1} parent=1 // pred_check_branch
      %29 = sbr.rel (0) target = $region17
    $region16: #{tpu_custom_call.1} parent=1 // pred_region
      _
    $region17: #{tpu_custom_call.1} parent=1 // pred_fallthru
      _
    // Predicated region
    $region18: #{tpu_custom_call.1} parent=1 // pred_check
      _
    $region19: #{tpu_custom_call.1} parent=1 // pred_check_branch
      %31 = sbr.rel (0) target = $region21
    $region20: #{tpu_custom_call.1} parent=1 // pred_region
      %33 = dma.done [#allocation4], 1024
    $region21: #{tpu_custom_call.1} parent=1 // pred_fallthru
      _
    %p34 = scmp.eq.s32.totalorder 0, 0
    // Predicated region
    $region22: #{tpu_custom_call.1} parent=1 // pred_check
      %p35 = pneg %p34
    $region23: #{tpu_custom_call.1} parent=1 // pred_check_branch
      %37 = sbr.rel (%p35) target = $region25
    $region24: #{tpu_custom_call.1} parent=1 // pred_region
      %38 = vst [vmem:[#allocation2] sm:$0xff] 0.0
      %39 = vst [vmem:[#allocation2 + $0x8] sm:$0xff] 0.0
    $region25: #{tpu_custom_call.1} parent=1 // pred_fallthru
      _
    %v40 = vld [vmem:[#allocation2] sm:$0xff]
    %v41 = vld [vmem:[#allocation2 + $0x8] sm:$0xff]
    %v42 = vld [vmem:[%s0] sm:$0xf]
    %v43 = vld [vmem:[%s0 + $0x4] sm:$0xf]
    %v44 = vld [vmem:[#allocation3] sm:$0xf]
    %v45 = vld [vmem:[#allocation3 + $0x4] sm:$0xf]
    %v46 = vld [vmem:[#allocation3 + $0x8] sm:$0xf]
    %v47 = vld [vmem:[#allocation3 + $0xc] sm:$0xf]
    %v48 = vld [vmem:[#allocation3 + $0x10] sm:$0xf]
    %v49 = vld [vmem:[#allocation3 + $0x14] sm:$0xf]
    %v50 = vld [vmem:[#allocation3 + $0x18] sm:$0xf]
    %v51 = vld [vmem:[#allocation3 + $0x1c] sm:$0xf]
    %v52 = vld [vmem:[#allocation3 + $0x20] sm:$0xf]
    %v53 = vld [vmem:[#allocation3 + $0x24] sm:$0xf]
    %v54 = vld [vmem:[#allocation3 + $0x28] sm:$0xf]
    %v55 = vld [vmem:[#allocation3 + $0x2c] sm:$0xf]
    %v56 = vld [vmem:[#allocation3 + $0x30] sm:$0xf]
    %v57 = vld [vmem:[#allocation3 + $0x34] sm:$0xf]
    %v58 = vld [vmem:[#allocation3 + $0x38] sm:$0xf]
    %v59 = vld [vmem:[#allocation3 + $0x3c] sm:$0xf]
    %v62 = vunpack.c.l.b16 %v42
    %v63 = vunpack.c.l.b16 %v43
    %v64 = vpack.c.b16 %v63, %v62
    %v82 = vunpack.c.l.b16 %v44
    %v83 = vunpack.c.l.b16 %v45
    %v84 = vunpack.c.l.b16 %v46
    %v85 = vunpack.c.l.b16 %v47
    %v86 = vunpack.c.l.b16 %v48
    %v87 = vunpack.c.l.b16 %v49
    %v88 = vunpack.c.l.b16 %v50
    %v89 = vunpack.c.l.b16 %v51
    %v90 = vunpack.c.l.b16 %v52
    %v91 = vunpack.c.l.b16 %v53
    %v92 = vunpack.c.l.b16 %v54
    %v93 = vunpack.c.l.b16 %v55
    %v94 = vunpack.c.l.b16 %v56
    %v95 = vunpack.c.l.b16 %v57
    %v96 = vunpack.c.l.b16 %v58
    %v97 = vunpack.c.l.b16 %v59
    %v98 = vpack.c.b16 %v83, %v82
    %v99 = vpack.c.b16 %v85, %v84
    %v100 = vpack.c.b16 %v87, %v86
    %v101 = vpack.c.b16 %v89, %v88
    %v102 = vpack.c.b16 %v91, %v90
    %v103 = vpack.c.b16 %v93, %v92
    %v104 = vpack.c.b16 %v95, %v94
    %v105 = vpack.c.b16 %v97, %v96
    %114 = vmatpush.bf16.msra.mxu0 %v105
    %115 = vmatpush.bf16.msra.mxu0 %v104
    %116 = vmatpush.bf16.msra.mxu0 %v103
    %117 = vmatpush.bf16.msra.mxu0 %v102
    %118 = vmatpush.bf16.msra.mxu0 %v101
    %119 = vmatpush.bf16.msra.mxu0 %v100
    %120 = vmatpush.bf16.msra.mxu0 %v99
    %121 = vmatpush.bf16.msra.mxu0 %v98
    %122 = vmatmul.bf16.gmra.mxu0 %v64
    %v123 = vpop.f32.mrf.mxu0
    %v124 = vadd.f32 0.0, %v123
    %v125 = vpop.f32.mrf.mxu0
    %v126 = vadd.f32 0.0, %v125
    %127 = vdwg.mxu0
    %v128 = vadd.f32 %v40, %v124
    %v129 = vadd.f32 %v41, %v126
    %130 = vst [vmem:[#allocation2] sm:$0xff] %v128
    %131 = vst [vmem:[#allocation2 + $0x8] sm:$0xff] %v129
    // Predicated region
    $region26: #{tpu_custom_call.1} parent=1 // pred_check
      %p132 = pneg %p34
    $region27: #{tpu_custom_call.1} parent=1 // pred_check_branch
      %134 = sbr.rel (%p132) target = $region29
    $region28: #{tpu_custom_call.1} parent=1 // pred_region
      %v135 = vld [vmem:[#allocation2] sm:$0xff]
      %v136 = vld [vmem:[#allocation2 + $0x8] sm:$0xff]
      %v137 = vld [vmem:[%s2] sm:$0x1]
      %v139 = vperm.slane %v137, 0
      %v141 = vadd.f32 %v135, %v139
      %v142 = vadd.f32 %v136, %v139
      %v143 = vld [vmem:[%s3] sm:$0xff]
      %v144 = vld [vmem:[%s3 + $0x8] sm:$0xff]
      %146 = vset.pattern.permute.xlu0 0
      %147 = vperm.xlu0 %146, %v143
      %v148 = vpop.permute.xlu0 %147
      %151 = vset.pattern.permute.xlu0 0
      %152 = vperm.xlu0 %151, %v144
      %v153 = vpop.permute.xlu0 %152
      %v155 = vmul.f32 %v141, %v148
      %v156 = vmul.f32 %v142, %v153
      %v157 = vpack.c.bf16 %v155, %v155
      %v158 = vpack.c.bf16 %v156, %v156
      %159 = vst [vmem:[#allocation6] sm:$0xf] %v157
      %160 = vst [vmem:[#allocation6 + $0x4] sm:$0xf] %v158
    $region29: #{tpu_custom_call.1} parent=1 // pred_fallthru
      _
    // Predicated region
    $region30: #{tpu_custom_call.1} parent=1 // pred_check
      _
    $region31: #{tpu_custom_call.1} parent=1 // pred_check_branch
      %162 = sbr.rel (0) target = $region33
    $region32: #{tpu_custom_call.1} parent=1 // pred_region
      %164 = vsyncadd [#allocation5], 0
      %s165 = sshll.u32 [#allocation6], 4
      %s166 = int_to_ptr.vmem [resolvable:$true] %s165
      %s167 = sshll.u32 %s4, 4
      %s168 = int_to_ptr.hbm [resolvable:$true] %s167
      %173 = dma.vmem_to_hbm [thread:$0]  %s166, 128, %s168, [#allocation5], 64, 64, 4
    $region33: #{tpu_custom_call.1} parent=1 // pred_fallthru
      _
    // Predicated region
    $region34: #{tpu_custom_call.1} parent=1 // pred_check
      _
    $region35: #{tpu_custom_call.1} parent=1 // pred_check_branch
      %175 = sbr.rel (0) target = $region37
    $region36: #{tpu_custom_call.1} parent=1 // pred_region
      %177 = dma.done [#allocation5], 128
    $region37: #{tpu_custom_call.1} parent=1 // pred_fallthru
      _
    %178 = vsyncpa [#allocation4], 1
    %179 = vsyncpa [#allocation5], 1

</llo_original>
